<compile_context>
chip_gen: v6e
topology: v6e:2x2x1
jax: 0.10.0
libtpu: 0.0.40
codegen_flags: <defaults>
</compile_context>

<pallas_src>
import functools

import jax
import jax.numpy as jnp
from jax.experimental import pallas as pl
from jax.experimental.pallas import tpu as pltpu

_NEG_BIAS = -1e30  # finite "-inf": exp underflows to exactly 0 after max-subtract


def _scope_recognizer_kernel(q_ref, k_ref, wq_ref, bq_ref, wk_ref, bk_ref,
                             o_ref, *, tq, n):
    # Projections: bf16 activations/weights -> f32 accumulation on the MXU.
    # Weights were pre-transposed in the wrapper, so these are plain NN feeds.
    qs = jnp.dot(q_ref[...], wq_ref[...],
                 preferred_element_type=jnp.float32) + bq_ref[...]   # (tq, E) f32
    ks = jnp.dot(k_ref[...], wk_ref[...],
                 preferred_element_type=jnp.float32) + bk_ref[...]   # (L,  E) f32

    # NT logits: contract E of qs with E of ks directly (no ks.T materialized).
    logits = jax.lax.dot_general(
        qs, ks, (((1,), (1,)), ((), ())),
        preferred_element_type=jnp.float32)                           # (tq, L)

    # Band bias generated in-kernel (no mask input): 0 where |i-j| <= n-1,
    # else -1e30.  Row indices are offset by the q-tile position so this
    # stays correct when L is tiled across the second grid axis.
    kv_len = k_ref.shape[0]
    row = pl.program_id(1) * tq + jax.lax.broadcasted_iota(
        jnp.int32, (tq, kv_len), 0)
    col = jax.lax.broadcasted_iota(jnp.int32, (tq, kv_len), 1)
    in_band = jnp.abs(row - col) <= (n - 1)
    logits = jnp.where(in_band, logits, _NEG_BIAS)

    # Numerically-stable softmax over kv; EXACT normalize (rows sum to 1).
    m = jnp.max(logits, axis=-1, keepdims=True)
    e = jnp.exp(logits - m)
    s = jnp.sum(e, axis=-1, keepdims=True)
    o_ref[...] = (e / s).astype(o_ref.dtype)


@functools.partial(jax.jit, static_argnames=("n",))
def scope_recognizer(q, k, wq, bq, wk, bk, *, n=5):
    """q, k: [B, L, E] float32. wq, wk: [E, E] (PyTorch layout, out x in).
    bq, bk: [E]. Returns attn_probs [B, L, L] (softmax over the |i-j| <= n-1
    band, matching the PyTorch forward)."""
    B, L, E = q.shape
    tq = L if L <= 128 else 128               # q-tile rows per grid step
    num_q_tiles = (L + tq - 1) // tq

    # bf16 feeds for the MXU (halves q/k/weight DMA bytes); biases stay f32.
    q_bf = q.astype(jnp.bfloat16)
    k_bf = k.astype(jnp.bfloat16)
    # One-time wrapper-side transpose of the (E, E) PyTorch [out, in] weights:
    # guarantees a plain (M,K)x(K,N) MXU feed with no in-kernel vxpose.
    wq_t = wq.T.astype(jnp.bfloat16)
    wk_t = wk.T.astype(jnp.bfloat16)
    bq2 = bq.reshape(1, E).astype(jnp.float32)
    bk2 = bk.reshape(1, E).astype(jnp.float32)

    # Rough per-step VMEM footprint (double-buffered I/O + f32 temporaries).
    per_step = (tq * E * 2 + L * E * 2            # q, k tiles (bf16)
                + 2 * E * E * 2 + 2 * E * 4       # weights (bf16), biases (f32)
                + tq * L * 4)                     # output tile (f32)
    vmem_estimate = 2 * per_step + 6 * tq * L * 4
    compiler_kwargs = {}
    if vmem_estimate > 16 * 1024 * 1024:
        # v5e's default scoped VMEM limit is only 16 MiB (vs 32 MiB v6e/v7x);
        # raise it explicitly for larger L.  Cap below v7x's 64 MiB physical.
        compiler_kwargs["vmem_limit_bytes"] = min(2 * vmem_estimate,
                                                  60 * 1024 * 1024)
    compiler_params = pltpu.CompilerParams(
        dimension_semantics=("parallel", "parallel"), **compiler_kwargs)

    kernel = functools.partial(_scope_recognizer_kernel, tq=tq, n=n)

    return pl.pallas_call(
        kernel,
        out_shape=jax.ShapeDtypeStruct((B, L, L), jnp.float32),
        grid=(B, num_q_tiles),
        in_specs=[
            pl.BlockSpec((None, tq, E), lambda b, qi: (b, qi, 0)),   # q tile
            pl.BlockSpec((None, L, E), lambda b, qi: (b, 0, 0)),     # k (full kv)
            pl.BlockSpec((E, E), lambda b, qi: (0, 0)),              # Wq^T
            pl.BlockSpec((1, E), lambda b, qi: (0, 0)),              # bq
            pl.BlockSpec((E, E), lambda b, qi: (0, 0)),              # Wk^T
            pl.BlockSpec((1, E), lambda b, qi: (0, 0)),              # bk
        ],
        out_specs=pl.BlockSpec((None, tq, L), lambda b, qi: (b, qi, 0)),
        compiler_params=compiler_params,
    )(q_bf, k_bf, wq_t, bq2, wk_t, bk2)


def _reference(q, k, wq, bq, wk, bk, n=5):
    # Pure-JAX f32 reference replicating the PyTorch forward exactly.
    B, L, E = q.shape
    qs = q @ wq.T + bq
    ks = k @ wk.T + bk
    logits = jnp.einsum("ble,bme->blm", qs, ks)
    row = jnp.arange(L)[:, None]
    col = jnp.arange(L)[None, :]
    mask = jnp.where(jnp.abs(row - col) <= (n - 1), 0.0, -jnp.inf)
    return jax.nn.softmax(logits + mask[None], axis=-1)


if __name__ == "__main__":
    B, L, HIDDEN = 2, 8, 32
    key = jax.random.PRNGKey(0)
    kq, kk, kwq, kbq, kwk, kbk = jax.random.split(key, 6)

    q = jax.random.normal(kq, (B, L, HIDDEN), dtype=jnp.float32)
    k = jax.random.normal(kk, (B, L, HIDDEN), dtype=jnp.float32)

    # Deterministic synthetic parameters (PyTorch nn.Linear shapes: [out, in], [out]).
    bound = 1.0 / (HIDDEN ** 0.5)
    wq = jax.random.uniform(kwq, (HIDDEN, HIDDEN), jnp.float32, -bound, bound)
    bq = jax.random.uniform(kbq, (HIDDEN,), jnp.float32, -bound, bound)
    wk = jax.random.uniform(kwk, (HIDDEN, HIDDEN), jnp.float32, -bound, bound)
    bk = jax.random.uniform(kbk, (HIDDEN,), jnp.float32, -bound, bound)

    out = scope_recognizer(q, k, wq, bq, wk, bk, n=5)
    out = jax.block_until_ready(out)

    ref = _reference(q, k, wq, bq, wk, bk, n=5)
    assert out.shape == (B, L, L)
    # Tolerance covers the bf16 matmul inputs (f32 accumulation + f32 softmax);
    # real bugs (mask/matmul) would show O(0.1-1) errors.
    err = jnp.max(jnp.abs(out - ref))
    assert err < 2e-2, f"mismatch vs reference: {err}"
    # Exact normalization: every row sums to 1.
    assert jnp.max(jnp.abs(jnp.sum(out, axis=-1) - 1.0)) < 1e-5

    print("KERNEL_OK")
</pallas_src>

<mosaic_0001>
module attributes {stable_mosaic.version = 11 : i64} {
  func.func @_scope_recognizer_kernel(%arg0: i32, %arg1: i32, %arg2: memref<1x8x32xbf16, #tpu.memory_space<vmem>>, %arg3: memref<1x8x32xbf16, #tpu.memory_space<vmem>>, %arg4: memref<32x32xbf16, #tpu.memory_space<vmem>>, %arg5: memref<1x32xf32, #tpu.memory_space<vmem>>, %arg6: memref<32x32xbf16, #tpu.memory_space<vmem>>, %arg7: memref<1x32xf32, #tpu.memory_space<vmem>>, %arg8: memref<1x8x8xf32, #tpu.memory_space<vmem>>) attributes {dimension_semantics = [#tpu.dimension_semantics<parallel>, #tpu.dimension_semantics<parallel>], iteration_bounds = array<i64: 2, 1>, scalar_prefetch = 0 : i64, scratch_operands = 0 : i64, tpu.core_type = #tpu.core_type<tc>, window_params = [{transform_indices = @transform_0, window_bounds = array<i64: 1, 8, 32>}, {transform_indices = @transform_1, window_bounds = array<i64: 1, 8, 32>}, {pipeline_mode = #tpu.pipeline_mode<synchronous>, transform_indices = @transform_2, window_bounds = array<i64: 32, 32>}, {pipeline_mode = #tpu.pipeline_mode<synchronous>, transform_indices = @transform_3, window_bounds = array<i64: 1, 32>}, {pipeline_mode = #tpu.pipeline_mode<synchronous>, transform_indices = @transform_4, window_bounds = array<i64: 32, 32>}, {pipeline_mode = #tpu.pipeline_mode<synchronous>, transform_indices = @transform_5, window_bounds = array<i64: 1, 32>}, {transform_indices = @transform_6, window_bounds = array<i64: 1, 8, 8>}]} {
    %c0 = arith.constant 0 : index
    %c0_0 = arith.constant 0 : index
    %c0_1 = arith.constant 0 : index
    %0 = vector.load %arg2[%c0, %c0_0, %c0_1] : memref<1x8x32xbf16, #tpu.memory_space<vmem>>, vector<1x8x32xbf16>
    %1 = vector.shape_cast %0 : vector<1x8x32xbf16> to vector<8x32xbf16>
    %c0_2 = arith.constant 0 : index
    %c0_3 = arith.constant 0 : index
    %2 = vector.load %arg4[%c0_2, %c0_3] : memref<32x32xbf16, #tpu.memory_space<vmem>>, vector<32x32xbf16>
    %cst = arith.constant dense<0.000000e+00> : vector<8x32xf32>
    %3 = tpu.matmul %1, %2, %cst {dimension_numbers = #tpu.dot_dimension_numbers<[1], [0], [0], [1], [0, 0, 1, 1], [], []>} : vector<8x32xbf16>, vector<32x32xbf16>, vector<8x32xf32> -> vector<8x32xf32>
    %c0_4 = arith.constant 0 : index
    %c0_5 = arith.constant 0 : index
    %4 = vector.load %arg5[%c0_4, %c0_5] : memref<1x32xf32, #tpu.memory_space<vmem>>, vector<1x32xf32>
    %5 = vector.broadcast %4 : vector<1x32xf32> to vector<8x32xf32>
    %6 = arith.addf %3, %5 : vector<8x32xf32>
    %c0_6 = arith.constant 0 : index
    %c0_7 = arith.constant 0 : index
    %c0_8 = arith.constant 0 : index
    %7 = vector.load %arg3[%c0_6, %c0_7, %c0_8] : memref<1x8x32xbf16, #tpu.memory_space<vmem>>, vector<1x8x32xbf16>
    %8 = vector.shape_cast %7 : vector<1x8x32xbf16> to vector<8x32xbf16>
    %c0_9 = arith.constant 0 : index
    %c0_10 = arith.constant 0 : index
    %9 = vector.load %arg6[%c0_9, %c0_10] : memref<32x32xbf16, #tpu.memory_space<vmem>>, vector<32x32xbf16>
    %cst_11 = arith.constant dense<0.000000e+00> : vector<8x32xf32>
    %10 = tpu.matmul %8, %9, %cst_11 {dimension_numbers = #tpu.dot_dimension_numbers<[1], [0], [0], [1], [0, 0, 1, 1], [], []>} : vector<8x32xbf16>, vector<32x32xbf16>, vector<8x32xf32> -> vector<8x32xf32>
    %c0_12 = arith.constant 0 : index
    %c0_13 = arith.constant 0 : index
    %11 = vector.load %arg7[%c0_12, %c0_13] : memref<1x32xf32, #tpu.memory_space<vmem>>, vector<1x32xf32>
    %12 = vector.broadcast %11 : vector<1x32xf32> to vector<8x32xf32>
    %13 = arith.addf %10, %12 : vector<8x32xf32>
    %cst_14 = arith.constant dense<0.000000e+00> : vector<8x8xf32>
    %14 = tpu.matmul %6, %13, %cst_14 {dimension_numbers = #tpu.dot_dimension_numbers<[1], [1], [0], [0], [0, 0, 1, 0], [], []>} : vector<8x32xf32>, vector<8x32xf32>, vector<8x8xf32> -> vector<8x8xf32>
    %c8_i32 = arith.constant 8 : i32
    %15 = arith.muli %arg1, %c8_i32 : i32
    %16 = tpu.iota {dimensions = array<i32: 0>} : vector<8x8xi32>
    %17 = vector.broadcast %15 : i32 to vector<8x8xi32>
    %18 = arith.addi %17, %16 : vector<8x8xi32>
    %19 = tpu.iota {dimensions = array<i32: 1>} : vector<8x8xi32>
    %20 = arith.subi %18, %19 : vector<8x8xi32>
    %21 = math.absi %20 : vector<8x8xi32>
    %c4_i32 = arith.constant 4 : i32
    %22 = vector.broadcast %c4_i32 : i32 to vector<8x8xi32>
    %23 = arith.cmpi sle, %21, %22 : vector<8x8xi32>
    %cst_15 = arith.constant -1.000000e+30 : f32
    %24 = vector.broadcast %cst_15 : f32 to vector<8x8xf32>
    %25 = arith.select %23, %14, %24 : vector<8x8xi1>, vector<8x8xf32>
    %cst_16 = arith.constant dense<0xFF800000> : vector<8xf32>
    %26 = vector.multi_reduction <maximumf>, %25, %cst_16 [1] : vector<8x8xf32> to vector<8xf32>
    %27 = vector.shape_cast %26 : vector<8xf32> to vector<8x1xf32>
    %28 = vector.broadcast %27 : vector<8x1xf32> to vector<8x8xf32>
    %29 = arith.subf %25, %28 : vector<8x8xf32>
    %30 = math.exp %29 : vector<8x8xf32>
    %cst_17 = arith.constant dense<0.000000e+00> : vector<8xf32>
    %31 = vector.multi_reduction <add>, %30, %cst_17 [1] : vector<8x8xf32> to vector<8xf32>
    %32 = vector.shape_cast %31 : vector<8xf32> to vector<8x1xf32>
    %33 = vector.broadcast %32 : vector<8x1xf32> to vector<8x8xf32>
    %34 = arith.divf %30, %33 : vector<8x8xf32>
    %c0_18 = arith.constant 0 : index
    %c0_19 = arith.constant 0 : index
    %c0_20 = arith.constant 0 : index
    %35 = vector.load %arg8[%c0_18, %c0_19, %c0_20] : memref<1x8x8xf32, #tpu.memory_space<vmem>>, vector<1x8x8xf32>
    %36 = vector.shape_cast %35 : vector<1x8x8xf32> to vector<8x8xf32>
    %37 = vector.shape_cast %34 : vector<8x8xf32> to vector<1x8x8xf32>
    tpu.vector_store %arg8[%c0_18, %c0_19, %c0_20], %37 {strides = array<i32>} : memref<1x8x8xf32, #tpu.memory_space<vmem>>, vector<1x8x8xf32>,
    return
  }
  func.func @transform_0(%arg0: i32, %arg1: i32) -> (i32, i32, i32) {
    %c0_i32 = arith.constant 0 : i32
    %c0_i32_0 = arith.constant 0 : i32
    return %arg0, %arg1, %c0_i32 : i32, i32, i32
  }
  func.func @transform_1(%arg0: i32, %arg1: i32) -> (i32, i32, i32) {
    %c0_i32 = arith.constant 0 : i32
    %c0_i32_0 = arith.constant 0 : i32
    %c0_i32_1 = arith.constant 0 : i32
    return %arg0, %c0_i32, %c0_i32_0 : i32, i32, i32
  }
  func.func @transform_2(%arg0: i32, %arg1: i32) -> (i32, i32) {
    %c0_i32 = arith.constant 0 : i32
    %c0_i32_0 = arith.constant 0 : i32
    %c0_i32_1 = arith.constant 0 : i32
    return %c0_i32, %c0_i32_0 : i32, i32
  }
  func.func @transform_3(%arg0: i32, %arg1: i32) -> (i32, i32) {
    %c0_i32 = arith.constant 0 : i32
    %c0_i32_0 = arith.constant 0 : i32
    %c0_i32_1 = arith.constant 0 : i32
    return %c0_i32, %c0_i32_0 : i32, i32
  }
  func.func @transform_4(%arg0: i32, %arg1: i32) -> (i32, i32) {
    %c0_i32 = arith.constant 0 : i32
    %c0_i32_0 = arith.constant 0 : i32
    %c0_i32_1 = arith.constant 0 : i32
    return %c0_i32, %c0_i32_0 : i32, i32
  }
  func.func @transform_5(%arg0: i32, %arg1: i32) -> (i32, i32) {
    %c0_i32 = arith.constant 0 : i32
    %c0_i32_0 = arith.constant 0 : i32
    %c0_i32_1 = arith.constant 0 : i32
    return %c0_i32, %c0_i32_0 : i32, i32
  }
  func.func @transform_6(%arg0: i32, %arg1: i32) -> (i32, i32, i32) {
    %c0_i32 = arith.constant 0 : i32
    %c0_i32_0 = arith.constant 0 : i32
    return %arg0, %arg1, %c0_i32 : i32, i32, i32
  }
}

</mosaic_0001>

<llo_original>
// kernel: scope_recognizer.1
$region0: #{scope_recognizer.1}
  #allocation0 [shape = 'u32[]', space=smem, size = 0x4, offset = 0x4, fixed_abs, tag = 'smem constant byte address 0x4 - core index']
  #allocation1 [shape = 'u32[144,128]{1,0:T(1,128)}', space=vmem, size = 0x12000, scoped, tag = 'internal scratch']
  %s0 = inlined_call_operand.vmem [shape: bf16[2,8,32], index: 0, kind: input, shape index: {}]
  %s1 = inlined_call_operand.vmem [shape: bf16[2,8,32], index: 1, kind: input, shape index: {}]
  %s2 = inlined_call_operand.vmem [shape: bf16[32,32], index: 2, kind: input, shape index: {}]
  %s3 = inlined_call_operand.vmem [shape: f32[1,32], index: 3, kind: input, shape index: {}]
  %s4 = inlined_call_operand.vmem [shape: bf16[32,32], index: 4, kind: input, shape index: {}]
  %s5 = inlined_call_operand.vmem [shape: f32[1,32], index: 5, kind: input, shape index: {}]
  %s6 = inlined_call_operand.hbm [shape: f32[2,8,8], index: 6, kind: output, shape index: {}]
  %s7 = sld [smem:[#allocation0]]
  $region57: #{scope_recognizer.1} parent=0
    _
  %s9 = ssub.s32 1, %s7
  %s10 = scalar_select 0, %s9, %s7
  $region1: #{scope_recognizer.1} parent=0
    #allocation2 [shape = 'u8[8192]{0}', space=vmem, size = 0x2000, scoped, tag = 'output window, operand 0']
    #allocation3 [shape = 's32[2]{0}', space=sflag, size = 0x8, scoped, tag = 'scoped memory for scope_recognizer.1']
    %11 = vsyncpa [#allocation3], 0
    %s12 = scalar_lea.sflag [#allocation3], 1
    %13 = vsyncpa %s12, 0
    loop: start=0, step=1, limit=4
    $region2: #{scope_recognizer.1} parent=1 // loop_pre_header
      _
    $region3: #{scope_recognizer.1} parent=1 // loop_header
      %s15 = sphi 0, %s19
      %p16 = scmp.ge.s32.totalorder %s15, 4
      %s22 = sphi 0, %s34
      %s23 = sphi 0, %s30
      %s24 = sphi 0, %s22
      %s25 = sphi 0, %s23
      %s26 = sphi 0, %s24
      %s27 = sphi 0, %s25
      %s39 = sphi 0, %s41
      %s42 = sphi 0, %s39
      %s43 = sphi 0, %s42
      %s59 = sphi 0, %s43
      %s65 = sphi 0, %s67
      %s68 = sphi 0, %s65
      %s69 = sphi 0, %s68
      %s85 = sphi 0, %s69
      %s89 = sphi 0, %s89
      %s91 = sphi 0, %s89
      %s92 = sphi 0, %s91
      %s106 = sphi 0, %s92
      %s110 = sphi 0, %s110
      %s112 = sphi 0, %s110
      %s113 = sphi 0, %s112
      %s127 = sphi 0, %s113
      %s131 = sphi 0, %s131
      %s133 = sphi 0, %s131
      %s134 = sphi 0, %s133
      %s148 = sphi 0, %s134
      %s152 = sphi 0, %s152
      %s154 = sphi 0, %s152
      %s155 = sphi 0, %s154
      %s169 = sphi 0, %s155
      %s177 = sphi 0, %s179
      %s180 = sphi 0, %s177
      %s181 = sphi 0, %s180
      %s197 = sphi 0, %s181
    $region4: #{scope_recognizer.1} parent=1 // loop_header_branch
      %18 = sbr.rel (%p16) target = $region8
    $region5: #{scope_recognizer.1} parent=1 // loop_body
      %s20 = ssub.s32 %s15, 1
      %s21 = ssub.s32 %s15, 2
      %s28 = sadd.s32 1, %s23
      %p29 = scmp.ge.s32.totalorder %s28, 1
      %s30 = scalar_select %p29, 0, %s28
      %s31 = sadd.s32 1, %s22
      %s32 = scalar_select %p29, %s31, %s22
      %p33 = scmp.ge.s32.totalorder %s32, 2
      %s34 = scalar_select %p33, 0, %s32
      %s35 = ssub.s32 %s22, %s34
      %s36 = ssub.s32 %s23, %s30
      %s37 = sor.u32 %s35, %s36
      %p38 = scmp.eq.s32.totalorder %s37, 0
      %s40 = sadd.s32 %s39, 1
      %s41 = scalar_select %p38, %s39, %s40
      %p44 = pneg %p38
      %p45 = scmp.eq.s32.totalorder %s15, 1
      %p46 = por %p44, %p45
      %p47 = scmp.ne.s32.totalorder %s39, %s42
      %p48 = scmp.eq.s32.totalorder %s15, 0
      %p49 = por %p47, %p48
      %p50 = scmp.ne.s32.totalorder %s39, %s42
      %p51 = scmp.eq.s32.totalorder %s20, 1
      %p52 = por %p50, %p51
      %p53 = scmp.ne.s32.totalorder %s42, %s43
      %p54 = scmp.eq.s32.totalorder %s20, 0
      %p55 = por %p53, %p54
      %p56 = scmp.ne.s32.totalorder %s42, %s43
      %p57 = scmp.eq.s32.totalorder %s21, 1
      %p58 = por %p56, %p57
      %p60 = scmp.ne.s32.totalorder %s43, %s59
      %p61 = scmp.eq.s32.totalorder %s21, 0
      %p62 = por %p60, %p61
      %s63 = ssub.s32 %s22, %s34
      %p64 = scmp.eq.s32.totalorder %s63, 0
      %s66 = sadd.s32 %s65, 1
      %s67 = scalar_select %p64, %s65, %s66
      %p70 = pneg %p64
      %p71 = scmp.eq.s32.totalorder %s15, 1
      %p72 = por %p70, %p71
      %p73 = scmp.ne.s32.totalorder %s65, %s68
      %p74 = scmp.eq.s32.totalorder %s15, 0
      %p75 = por %p73, %p74
      %p76 = scmp.ne.s32.totalorder %s65, %s68
      %p77 = scmp.eq.s32.totalorder %s20, 1
      %p78 = por %p76, %p77
      %p79 = scmp.ne.s32.totalorder %s68, %s69
      %p80 = scmp.eq.s32.totalorder %s20, 0
      %p81 = por %p79, %p80
      %p82 = scmp.ne.s32.totalorder %s68, %s69
      %p83 = scmp.eq.s32.totalorder %s21, 1
      %p84 = por %p82, %p83
      %p86 = scmp.ne.s32.totalorder %s69, %s85
      %p87 = scmp.eq.s32.totalorder %s21, 0
      %p88 = por %p86, %p87
      %s90 = sadd.s32 %s89, 1
      %p93 = scmp.eq.s32.totalorder %s15, 1
      %p94 = scmp.ne.s32.totalorder %s89, %s91
      %p95 = scmp.eq.s32.totalorder %s15, 0
      %p96 = por %p94, %p95
      %p97 = scmp.ne.s32.totalorder %s89, %s91
      %p98 = scmp.eq.s32.totalorder %s20, 1
      %p99 = por %p97, %p98
      %p100 = scmp.ne.s32.totalorder %s91, %s92
      %p101 = scmp.eq.s32.totalorder %s20, 0
      %p102 = por %p100, %p101
      %p103 = scmp.ne.s32.totalorder %s91, %s92
      %p104 = scmp.eq.s32.totalorder %s21, 1
      %p105 = por %p103, %p104
      %p107 = scmp.ne.s32.totalorder %s92, %s106
      %p108 = scmp.eq.s32.totalorder %s21, 0
      %p109 = por %p107, %p108
      %s111 = sadd.s32 %s110, 1
      %p114 = scmp.eq.s32.totalorder %s15, 1
      %p115 = scmp.ne.s32.totalorder %s110, %s112
      %p116 = scmp.eq.s32.totalorder %s15, 0
      %p117 = por %p115, %p116
      %p118 = scmp.ne.s32.totalorder %s110, %s112
      %p119 = scmp.eq.s32.totalorder %s20, 1
      %p120 = por %p118, %p119
      %p121 = scmp.ne.s32.totalorder %s112, %s113
      %p122 = scmp.eq.s32.totalorder %s20, 0
      %p123 = por %p121, %p122
      %p124 = scmp.ne.s32.totalorder %s112, %s113
      %p125 = scmp.eq.s32.totalorder %s21, 1
      %p126 = por %p124, %p125
      %p128 = scmp.ne.s32.totalorder %s113, %s127
      %p129 = scmp.eq.s32.totalorder %s21, 0
      %p130 = por %p128, %p129
      %s132 = sadd.s32 %s131, 1
      %p135 = scmp.eq.s32.totalorder %s15, 1
      %p136 = scmp.ne.s32.totalorder %s131, %s133
      %p137 = scmp.eq.s32.totalorder %s15, 0
      %p138 = por %p136, %p137
      %p139 = scmp.ne.s32.totalorder %s131, %s133
      %p140 = scmp.eq.s32.totalorder %s20, 1
      %p141 = por %p139, %p140
      %p142 = scmp.ne.s32.totalorder %s133, %s134
      %p143 = scmp.eq.s32.totalorder %s20, 0
      %p144 = por %p142, %p143
      %p145 = scmp.ne.s32.totalorder %s133, %s134
      %p146 = scmp.eq.s32.totalorder %s21, 1
      %p147 = por %p145, %p146
      %p149 = scmp.ne.s32.totalorder %s134, %s148
      %p150 = scmp.eq.s32.totalorder %s21, 0
      %p151 = por %p149, %p150
      %s153 = sadd.s32 %s152, 1
      %p156 = scmp.eq.s32.totalorder %s15, 1
      %p157 = scmp.ne.s32.totalorder %s152, %s154
      %p158 = scmp.eq.s32.totalorder %s15, 0
      %p159 = por %p157, %p158
      %p160 = scmp.ne.s32.totalorder %s152, %s154
      %p161 = scmp.eq.s32.totalorder %s20, 1
      %p162 = por %p160, %p161
      %p163 = scmp.ne.s32.totalorder %s154, %s155
      %p164 = scmp.eq.s32.totalorder %s20, 0
      %p165 = por %p163, %p164
      %p166 = scmp.ne.s32.totalorder %s154, %s155
      %p167 = scmp.eq.s32.totalorder %s21, 1
      %p168 = por %p166, %p167
      %p170 = scmp.ne.s32.totalorder %s155, %s169
      %p171 = scmp.eq.s32.totalorder %s21, 0
      %p172 = por %p170, %p171
      %s173 = ssub.s32 %s22, %s34
      %s174 = ssub.s32 %s23, %s30
      %s175 = sor.u32 %s173, %s174
      %p176 = scmp.eq.s32.totalorder %s175, 0
      %s178 = sadd.s32 %s177, 1
      %s179 = scalar_select %p176, %s177, %s178
      %p182 = pneg %p176
      %p183 = scmp.eq.s32.totalorder %s15, 1
      %p184 = por %p182, %p183
      %p185 = scmp.ne.s32.totalorder %s177, %s180
      %p186 = scmp.eq.s32.totalorder %s15, 0
      %p187 = por %p185, %p186
      %p188 = scmp.ne.s32.totalorder %s177, %s180
      %p189 = scmp.eq.s32.totalorder %s20, 1
      %p190 = por %p188, %p189
      %p191 = scmp.ne.s32.totalorder %s180, %s181
      %p192 = scmp.eq.s32.totalorder %s20, 0
      %p193 = por %p191, %p192
      %p194 = scmp.ne.s32.totalorder %s180, %s181
      %p195 = scmp.eq.s32.totalorder %s21, 1
      %p196 = por %p194, %p195
      %p198 = scmp.ne.s32.totalorder %s181, %s197
      %p199 = scmp.eq.s32.totalorder %s21, 0
      %p200 = por %p198, %p199
      %p201 = scmp.le.s32.totalorder 1, %s15
      %p202 = scmp.lt.s32.totalorder %s15, 3
      %p203 = pnand %p201, %p202
      %p204 = pneg %p203
      // Predicated region
      $region9: #{scope_recognizer.1} parent=5 // pred_check
        _
      $region10: #{scope_recognizer.1} parent=5 // pred_check_branch
        %206 = sbr.rel (%p203) target = $region12
      $region11: #{scope_recognizer.1} parent=5 // pred_region
        %s207 = ssub.s32 %s15, 1
        // Predicated region
        $region13: #{scope_recognizer.1} parent=11 // pred_check
          %p208 = pneg %p102
        $region14: #{scope_recognizer.1} parent=11 // pred_check_branch
          %210 = sbr.rel (%p208) target = $region16
        $region15: #{scope_recognizer.1} parent=11 // pred_region
          _
        $region16: #{scope_recognizer.1} parent=11 // pred_fallthru
          _
        // Predicated region
        $region17: #{scope_recognizer.1} parent=11 // pred_check
          %p211 = pneg %p123
        $region18: #{scope_recognizer.1} parent=11 // pred_check_branch
          %213 = sbr.rel (%p211) target = $region20
        $region19: #{scope_recognizer.1} parent=11 // pred_region
          _
        $region20: #{scope_recognizer.1} parent=11 // pred_fallthru
          _
        // Predicated region
        $region21: #{scope_recognizer.1} parent=11 // pred_check
          %p214 = pneg %p144
        $region22: #{scope_recognizer.1} parent=11 // pred_check_branch
          %216 = sbr.rel (%p214) target = $region24
        $region23: #{scope_recognizer.1} parent=11 // pred_region
          _
        $region24: #{scope_recognizer.1} parent=11 // pred_fallthru
          _
        // Predicated region
        $region25: #{scope_recognizer.1} parent=11 // pred_check
          %p217 = pneg %p165
        $region26: #{scope_recognizer.1} parent=11 // pred_check_branch
          %219 = sbr.rel (%p217) target = $region28
        $region27: #{scope_recognizer.1} parent=11 // pred_region
          _
        $region28: #{scope_recognizer.1} parent=11 // pred_fallthru
          _
      $region12: #{scope_recognizer.1} parent=5 // pred_fallthru
        _
      %p220 = scmp.lt.s32.totalorder %s15, 2
      // Predicated region
      $region29: #{scope_recognizer.1} parent=5 // pred_check
        %p221 = pneg %p220
      $region30: #{scope_recognizer.1} parent=5 // pred_check_branch
        %223 = sbr.rel (%p221) target = $region32
      $region31: #{scope_recognizer.1} parent=5 // pred_region
        // Predicated region
        $region33: #{scope_recognizer.1} parent=31 // pred_check
          %p224 = pneg %p49
        $region34: #{scope_recognizer.1} parent=31 // pred_check_branch
          %226 = sbr.rel (%p224) target = $region36
        $region35: #{scope_recognizer.1} parent=31 // pred_region
          %p227 = scmp.lt.s32.totalorder %s22, 1
          %s228 = scalar_select %p227, %s22, 1
          %p229 = scmp.lt.s32.totalorder %s23, 0
          %s230 = scalar_select %p229, %s23, 0
          %s231 = sadd.s32 %s230, %s228
          %s232 = smul.addr %s231, 4
          %s233 = scalar_lea.vmem %s0, %s232
        $region36: #{scope_recognizer.1} parent=31 // pred_fallthru
          _
        // Predicated region
        $region37: #{scope_recognizer.1} parent=31 // pred_check
          %p234 = pneg %p75
        $region38: #{scope_recognizer.1} parent=31 // pred_check_branch
          %236 = sbr.rel (%p234) target = $region40
        $region39: #{scope_recognizer.1} parent=31 // pred_region
          %p237 = scmp.lt.s32.totalorder %s22, 1
          %s238 = scalar_select %p237, %s22, 1
          %s239 = smul.addr %s238, 4
          %s240 = scalar_lea.vmem %s1, %s239
        $region40: #{scope_recognizer.1} parent=31 // pred_fallthru
          _
      $region32: #{scope_recognizer.1} parent=5 // pred_fallthru
        _
      %p241 = scmp.le.s32.totalorder 1, %s15
      %p242 = scmp.lt.s32.totalorder %s15, 3
      %p243 = pnand %p241, %p242
      %p244 = pneg %p243
      // Predicated region
      $region41: #{scope_recognizer.1} parent=5 // pred_check
        _
      $region42: #{scope_recognizer.1} parent=5 // pred_check_branch
        %246 = sbr.rel (%p243) target = $region44
      $region43: #{scope_recognizer.1} parent=5 // pred_region
        %s247 = ssub.s32 %s15, 1
        %p248 = scmp.lt.s32.totalorder %s24, 1
        %s249 = scalar_select %p248, %s24, 1
        %p250 = scmp.lt.s32.totalorder %s25, 0
        %s251 = scalar_select %p250, %s25, 0
        %s252 = sadd.s32 %s251, %s249
        %s253 = smul.addr %s252, 4
        %s254 = scalar_lea.vmem %s0, %s253
        %p255 = pneg %p55
        %p256 = pneg %p52
        %p257 = scmp.lt.s32.totalorder %s24, 1
        %s258 = scalar_select %p257, %s24, 1
        %s259 = smul.addr %s258, 4
        %s260 = scalar_lea.vmem %s1, %s259
        %p261 = pneg %p81
        %p262 = pneg %p78
        %p263 = pneg %p102
        %p264 = pneg %p99
        %p265 = pneg %p123
        %p266 = pneg %p120
        %p267 = pneg %p144
        %p268 = pneg %p141
        %p269 = pneg %p165
        %p270 = pneg %p162
        %p271 = pneg %p193
        %p272 = pneg %p190
        %s273 = sand.u32 %s180, 1
        %s274 = scalar_lea.sflag [#allocation3], %s273
        %s275 = sand.u32 %s180, 1
        %s276 = smul.addr %s275, 8
        %s277 = scalar_lea.vmem [#allocation2], %s276
        %p278 = scmp.lt.s32.totalorder %s24, 1
        %s279 = scalar_select %p278, %s24, 1
        %p280 = scmp.lt.s32.totalorder %s25, 0
        %s281 = scalar_select %p280, %s25, 0
        %s282 = sadd.s32 %s281, %s279
        %s283 = smul.addr %s282, 4
        %s284 = scalar_lea.vmem %s0, %s283
        %p285 = scmp.lt.s32.totalorder %s24, 1
        %s286 = scalar_select %p285, %s24, 1
        %s287 = smul.addr %s286, 4
        %s288 = scalar_lea.vmem %s1, %s287
        %v290 = vld [vmem:[%s284] sm:$0xf]
        %v291 = vld [vmem:[%s2] sm:$0xf]
        %v292 = vld [vmem:[%s2 + $0x4] sm:$0xf]
        %v293 = vld [vmem:[%s2 + $0x8] sm:$0xf]
        %v294 = vld [vmem:[%s2 + $0xc] sm:$0xf]
        %v295 = vld [vmem:[%s3] sm:$0x1]
        %v297 = vlaneseq
        %v298 = vshrl.u32 %v297, 7
        %v299 = vsub.s32 0, %v298
        %v300 = vrot.slane %v295, %v299
        %v306 = vunpack.c.l.b16 %v291
        %v307 = vunpack.c.l.b16 %v292
        %v308 = vunpack.c.l.b16 %v293
        %v309 = vunpack.c.l.b16 %v294
        %v310 = vpack.c.b16 %v307, %v306
        %v311 = vpack.c.b16 %v309, %v308
        %vm314 = vcmask 261120
        %v316 = vsel %vm314, %v290, 0
        %318 = vmatprep.subr.bf16.mxu0 0
        %319 = vmatpush1.bf16.msra.mxu0 0
        %320 = vmatprep.subr.bf16.mxu0 0
        %321 = vmatpush1.bf16.msra.mxu0 0
        %322 = vmatprep.subr.bf16.mxu0 0
        %323 = vmatpush1.bf16.msra.mxu0 0
        %324 = vmatprep.subr.bf16.mxu0 0
        %325 = vmatpush1.bf16.msra.mxu0 0
        %326 = vmatprep.subr.bf16.mxu0 0
        %327 = vmatpush1.bf16.msra.mxu0 0
        %328 = vmatprep.subr.bf16.mxu0 0
        %329 = vmatpush1.bf16.msra.mxu0 0
        %330 = vmatprep.subr.bf16.mxu0 0
        %331 = vmatpush1.bf16.msra.mxu0 %v311
        %332 = vmatprep.subr.bf16.mxu0 0
        %333 = vmatpush1.bf16.msra.mxu0 %v310
        %334 = vmatprep.subr.bf16.mxu0 0
        %335 = vmatpush2.bf16.msra.mxu0 0
        %336 = vmatprep.subr.bf16.mxu0 0
        %337 = vmatpush2.bf16.msra.mxu0 0
        %338 = vmatprep.subr.bf16.mxu0 0
        %339 = vmatpush2.bf16.msra.mxu0 0
        %340 = vmatprep.subr.bf16.mxu0 0
        %341 = vmatpush2.bf16.msra.mxu0 0
        %342 = vmatprep.subr.bf16.mxu0 0
        %343 = vmatpush2.bf16.msra.mxu0 0
        %344 = vmatprep.subr.bf16.mxu0 0
        %345 = vmatpush2.bf16.msra.mxu0 0
        %346 = vmatprep.subr.bf16.mxu0 0
        %347 = vmatpush2.bf16.msra.mxu0 0
        %348 = vmatprep.subr.bf16.mxu0 0
        %349 = vmatpush2.bf16.msra.mxu0 0
        %350 = vmatprep.mubr.bf16.mxu0 0
        %351 = vmatmul.mubr.bf16.gmra.mxu0 %v316
        %v352 = vpop.f32.mrf.mxu0
        %v353 = vadd.f32 %v300, %v352
        %v354 = vpop.f32.mrf.mxu0
        %v355 = vpop.f32.mrf.mxu0
        %v356 = vpop.f32.mrf.mxu0
        %357 = vdwg.mxu0
        %v358 = vld [vmem:[%s288] sm:$0xf]
        %v359 = vld [vmem:[%s4] sm:$0xf]
        %v360 = vld [vmem:[%s4 + $0x4] sm:$0xf]
        %v361 = vld [vmem:[%s4 + $0x8] sm:$0xf]
        %v362 = vld [vmem:[%s4 + $0xc] sm:$0xf]
        %v363 = vld [vmem:[%s5] sm:$0x1]
        %v365 = vlaneseq
        %v366 = vshrl.u32 %v365, 7
        %v367 = vsub.s32 0, %v366
        %v368 = vrot.slane %v363, %v367
        %v374 = vunpack.c.l.b16 %v359
        %v375 = vunpack.c.l.b16 %v360
        %v376 = vunpack.c.l.b16 %v361
        %v377 = vunpack.c.l.b16 %v362
        %v378 = vpack.c.b16 %v375, %v374
        %v379 = vpack.c.b16 %v377, %v376
        %v383 = vsel %vm314, %v358, 0
        %385 = vmatprep.subr.bf16.mxu0 0
        %386 = vmatpush1.bf16.msra.mxu0 0
        %387 = vmatprep.subr.bf16.mxu0 0
        %388 = vmatpush1.bf16.msra.mxu0 0
        %389 = vmatprep.subr.bf16.mxu0 0
        %390 = vmatpush1.bf16.msra.mxu0 0
        %391 = vmatprep.subr.bf16.mxu0 0
        %392 = vmatpush1.bf16.msra.mxu0 0
        %393 = vmatprep.subr.bf16.mxu0 0
        %394 = vmatpush1.bf16.msra.mxu0 0
        %395 = vmatprep.subr.bf16.mxu0 0
        %396 = vmatpush1.bf16.msra.mxu0 0
        %397 = vmatprep.subr.bf16.mxu0 0
        %398 = vmatpush1.bf16.msra.mxu0 %v379
        %399 = vmatprep.subr.bf16.mxu0 0
        %400 = vmatpush1.bf16.msra.mxu0 %v378
        %401 = vmatprep.subr.bf16.mxu0 0
        %402 = vmatpush2.bf16.msra.mxu0 0
        %403 = vmatprep.subr.bf16.mxu0 0
        %404 = vmatpush2.bf16.msra.mxu0 0
        %405 = vmatprep.subr.bf16.mxu0 0
        %406 = vmatpush2.bf16.msra.mxu0 0
        %407 = vmatprep.subr.bf16.mxu0 0
        %408 = vmatpush2.bf16.msra.mxu0 0
        %409 = vmatprep.subr.bf16.mxu0 0
        %410 = vmatpush2.bf16.msra.mxu0 0
        %411 = vmatprep.subr.bf16.mxu0 0
        %412 = vmatpush2.bf16.msra.mxu0 0
        %413 = vmatprep.subr.bf16.mxu0 0
        %414 = vmatpush2.bf16.msra.mxu0 0
        %415 = vmatprep.subr.bf16.mxu0 0
        %416 = vmatpush2.bf16.msra.mxu0 0
        %417 = vmatprep.mubr.bf16.mxu0 0
        %418 = vmatmul.mubr.bf16.gmra.mxu0 %v383
        %v419 = vpop.f32.mrf.mxu0
        %v420 = vadd.f32 %v368, %v419
        %v421 = vpop.f32.mrf.mxu0
        %v422 = vpop.f32.mrf.mxu0
        %v423 = vpop.f32.mrf.mxu0
        %424 = vdwg.mxu0
        %v426 = vsel %vm314, %v353, 0
        %v429 = vsel %vm314, %v420, 0
        %431 = vmatprep.subr.mxu0 0.0
        %432 = vmatpush1.xpose.msra.mxu0 0.0
        %433 = vmatprep.subr.mxu0 0.0
        %434 = vmatpush1.xpose.msra.mxu0 0.0
        %435 = vmatprep.subr.mxu0 0.0
        %436 = vmatpush1.xpose.msra.mxu0 0.0
        %437 = vmatprep.subr.mxu0 0.0
        %438 = vmatpush1.xpose.msra.mxu0 0.0
        %439 = vmatprep.subr.mxu0 0.0
        %440 = vmatpush1.xpose.msra.mxu0 0.0
        %441 = vmatprep.subr.mxu0 0.0
        %442 = vmatpush1.xpose.msra.mxu0 0.0
        %443 = vmatprep.subr.mxu0 0.0
        %444 = vmatpush1.xpose.msra.mxu0 0.0
        %445 = vmatprep.subr.mxu0 0.0
        %446 = vmatpush1.xpose.msra.mxu0 0.0
        %447 = vmatprep.subr.mxu0 0.0
        %448 = vmatpush1.xpose.msra.mxu0 0.0
        %449 = vmatprep.subr.mxu0 0.0
        %450 = vmatpush1.xpose.msra.mxu0 0.0
        %451 = vmatprep.subr.mxu0 0.0
        %452 = vmatpush1.xpose.msra.mxu0 0.0
        %453 = vmatprep.subr.mxu0 0.0
        %454 = vmatpush1.xpose.msra.mxu0 0.0
        %455 = vmatprep.subr.mxu0 0.0
        %456 = vmatpush1.xpose.msra.mxu0 0.0
        %457 = vmatprep.subr.mxu0 0.0
        %458 = vmatpush1.xpose.msra.mxu0 0.0
        %459 = vmatprep.subr.mxu0 0.0
        %460 = vmatpush1.xpose.msra.mxu0 0.0
        %461 = vmatprep.subr.mxu0 0.0
        %462 = vmatpush1.xpose.msra.mxu0 %v429
        %463 = vmatprep.subr.mxu0 0.0
        %464 = vmatpush2.xpose.msra.mxu0 0.0
        %465 = vmatprep.subr.mxu0 0.0
        %466 = vmatpush2.xpose.msra.mxu0 0.0
        %467 = vmatprep.subr.mxu0 0.0
        %468 = vmatpush2.xpose.msra.mxu0 0.0
        %469 = vmatprep.subr.mxu0 0.0
        %470 = vmatpush2.xpose.msra.mxu0 0.0
        %471 = vmatprep.subr.mxu0 0.0
        %472 = vmatpush2.xpose.msra.mxu0 0.0
        %473 = vmatprep.subr.mxu0 0.0
        %474 = vmatpush2.xpose.msra.mxu0 0.0
        %475 = vmatprep.subr.mxu0 0.0
        %476 = vmatpush2.xpose.msra.mxu0 0.0
        %477 = vmatprep.subr.mxu0 0.0
        %478 = vmatpush2.xpose.msra.mxu0 0.0
        %479 = vmatprep.subr.mxu0 0.0
        %480 = vmatpush2.xpose.msra.mxu0 0.0
        %481 = vmatprep.subr.mxu0 0.0
        %482 = vmatpush2.xpose.msra.mxu0 0.0
        %483 = vmatprep.subr.mxu0 0.0
        %484 = vmatpush2.xpose.msra.mxu0 0.0
        %485 = vmatprep.subr.mxu0 0.0
        %486 = vmatpush2.xpose.msra.mxu0 0.0
        %487 = vmatprep.subr.mxu0 0.0
        %488 = vmatpush2.xpose.msra.mxu0 0.0
        %489 = vmatprep.subr.mxu0 0.0
        %490 = vmatpush2.xpose.msra.mxu0 0.0
        %491 = vmatprep.subr.mxu0 0.0
        %492 = vmatpush2.xpose.msra.mxu0 0.0
        %493 = vmatprep.subr.mxu0 0.0
        %494 = vmatpush2.xpose.msra.mxu0 0.0
        %495 = vmatprep.mubr.f32.mxu0 0.0
        %496 = vmatmul.mubr.f32.gmra.mxu0 %v426
        %v497 = vpop.f32.mrf.mxu0
        %v498 = vadd.f32 0.0, %v497
        %v499 = vpop.f32.mrf.mxu0
        %500 = vdwg.mxu0
        %s501 = smul.u32 %s25, 8
        %v502 = vlaneseq
        %v503 = vshrl.u32 %v502, 7
        %v504 = vstv %s501
        %v505 = vadd.s32 %v504, %v503
        %v506 = vlaneseq
        %v507 = vand.u32 %v506, 127
        %v508 = vsub.s32 %v505, %v507
        %vm509 = vcmp.lt.s32.totalorder %v508, 0
        %v510 = vsub.s32 0, %v508
        %v511 = vsel %vm509, %v510, %v508
        %vm512 = vcmp.le.s32.totalorder %v511, 4
        %v513 = vsel %vm512, %v498, -1e+30
        %vm514 = vcmask 64512
        %v515 = vsel %vm514, %v513, -inf
        %516 = vmax.xlane.f32.xlu0 %v515
        %v517 = vpop.xlane.xlu0 %516
        %v518 = vsub.f32 %v513, %v517
        %v519 = vmul.f32 %v518, 1.442695
        %v520 = vpow.pop %v519
        %v521 = vsel %vm514, %v520, 0.0
        %522 = vadd.xlane.f32.xlu0 %v521
        %v523 = vpop.xlane.xlu0 %522
        %v524 = vrcp.pop %v523
        %v525 = vmul.f32 %v520, %v524
        %526 = vst.msk [vmem:[%s277] sm:$0xff] %vm514, %v525
        %s527 = sand.u32 %s180, 1
        %s528 = scalar_lea.sflag [#allocation3], %s527
        %s529 = sand.u32 %s180, 1
        %s530 = smul.addr %s529, 8
        %s531 = scalar_lea.vmem [#allocation2], %s530
        // Predicated region
        $region45: #{scope_recognizer.1} parent=43 // pred_check
          %p532 = pneg %p190
        $region46: #{scope_recognizer.1} parent=43 // pred_check_branch
          %534 = sbr.rel (%p532) target = $region48
        $region47: #{scope_recognizer.1} parent=43 // pred_region
          %s536 = ssub.s32 128, 128
          %537 = vsyncadd %s528, %s536
          %s538 = sadd.s32 %s25, %s24
          %s539 = smul.addr %s538, 128
          %s540 = scalar_lea.hbm %s6, %s539
          %s542 = sshll.u32 %s531, 4
          %s543 = int_to_ptr.vmem [resolvable:$true] %s542
          %545 = dma.vmem_to_hbm [thread:$0]  %s543, 128, %s540, %s528
        $region48: #{scope_recognizer.1} parent=43 // pred_fallthru
          _
      $region44: #{scope_recognizer.1} parent=5 // pred_fallthru
        _
      %p546 = scmp.le.s32.totalorder 2, %s15
      // Predicated region
      $region49: #{scope_recognizer.1} parent=5 // pred_check
        %p547 = pneg %p546
      $region50: #{scope_recognizer.1} parent=5 // pred_check_branch
        %549 = sbr.rel (%p547) target = $region52
      $region51: #{scope_recognizer.1} parent=5 // pred_region
        %s550 = ssub.s32 %s15, 2
        // Predicated region
        $region53: #{scope_recognizer.1} parent=51 // pred_check
          %p551 = pneg %p196
        $region54: #{scope_recognizer.1} parent=51 // pred_check_branch
          %553 = sbr.rel (%p551) target = $region56
        $region55: #{scope_recognizer.1} parent=51 // pred_region
          %s554 = sand.u32 %s181, 1
          %s555 = scalar_lea.sflag [#allocation3], %s554
          %s556 = sand.u32 %s181, 1
          %s557 = smul.addr %s556, 8
          %s558 = scalar_lea.vmem [#allocation2], %s557
          %559 = dma.done %s555, 128
        $region56: #{scope_recognizer.1} parent=51 // pred_fallthru
          _
      $region52: #{scope_recognizer.1} parent=5 // pred_fallthru
        _
    $region6: #{scope_recognizer.1} parent=1 // loop_footer
      %s19 = sadd.s32 1, %s15
    $region7: #{scope_recognizer.1} parent=1 // loop_footer_branch
      %14 = sbr.rel target = $region3
    $region8: #{scope_recognizer.1} parent=1 // loop_exit
      _
    %560 = vsyncpa [#allocation3], 1
    %s561 = scalar_lea.sflag [#allocation3], 1
    %562 = vsyncpa %s561, 1

</llo_original>
